<compile_context>
chip_gen: v7x
topology: tpu7x:2x2x1
jax: 0.10.0
libtpu: 0.0.40
codegen_flags: <defaults>
</compile_context>

<pallas_src>
import functools

import jax
import jax.numpy as jnp
from jax.experimental import pallas as pl
from jax.experimental.pallas import tpu as pltpu


LANE = 128      # vreg lane width: pad all feature dims to this
SUBLANE = 8     # pad node count to a multiple of this


def _round_up(x, m):
    return ((x + m - 1) // m) * m


# ---------------------------------------------------------------------------
# Fused Pallas kernel: all GIN layers + final linear, fully VMEM-resident
# ---------------------------------------------------------------------------

def _gin_fused_kernel(a_ref, x_ref, w1_ref, b1_ref, w2_ref, b2_ref,
                      wl_ref, bl_ref, o_ref, *, num_layers):
    """Entire GIN forward in one kernel invocation.

    a_ref : [Np, Np]    bf16, A_hat = A + (1+eps)*I (edge counts, exact in bf16)
    x_ref : [Np, P]     f32 node features, feature dim zero-padded to P=128
    w1_ref: [L, P, P]   f32 first MLP weight per layer (zero-padded)
    b1_ref: [L, 1, P]   f32 first MLP bias per layer
    w2_ref: [L, P, P]   f32 second MLP weight per layer
    b2_ref: [L, 1, P]   f32 second MLP bias per layer
    wl_ref: [P, P]      f32 final linear weight (zero-padded)
    bl_ref: [1, P]      f32 final linear bias
    o_ref : [Np, P]     f32 output (caller slices [:N, :output_dim])
    """
    a = a_ref[...].astype(jnp.float32)   # one cheap VPU cast, exact values
    x = x_ref[...]
    for l in range(num_layers):          # static unroll, L is tiny
        # (1+eps)*x + neighbor-sum folded into a single MXU matmul via A_hat.
        h = jnp.dot(a, x, preferred_element_type=jnp.float32)
        # MLP: Linear -> ReLU -> Linear (all lane-dense 128-wide matmuls).
        h = jnp.dot(h, w1_ref[l], preferred_element_type=jnp.float32) + b1_ref[l]
        h = jnp.maximum(h, 0.0)
        h = jnp.dot(h, w2_ref[l], preferred_element_type=jnp.float32) + b2_ref[l]
        # outer ReLU applied after each conv in GIN.forward
        x = jnp.maximum(h, 0.0)
    out = jnp.dot(x, wl_ref[...], preferred_element_type=jnp.float32) + bl_ref[...]
    o_ref[...] = out.astype(o_ref.dtype)


_VMEM_SPEC = pl.BlockSpec(memory_space=pltpu.MemorySpace.VMEM)


@functools.partial(jax.jit,
                   static_argnames=("num_layers", "num_nodes", "output_dim"))
def gin_forward(packed, x_pad, adj_hat, *, num_layers, num_nodes, output_dim):
    n_pad = x_pad.shape[0]
    kernel = functools.partial(_gin_fused_kernel, num_layers=num_layers)
    out_pad = pl.pallas_call(
        kernel,
        out_shape=jax.ShapeDtypeStruct((n_pad, LANE), jnp.float32),
        in_specs=[_VMEM_SPEC] * 8,
        out_specs=_VMEM_SPEC,
        compiler_params=pltpu.CompilerParams(
            vmem_limit_bytes=32 * 1024 * 1024),
    )(adj_hat, x_pad, packed["w1"], packed["b1"], packed["w2"], packed["b2"],
      packed["wl"], packed["bl"])
    return out_pad[:num_nodes, :output_dim]


# ---------------------------------------------------------------------------
# Parameter / input packing (plain JAX glue, done once)
# ---------------------------------------------------------------------------

def init_gin_params(key, input_dim, hidden_dim, output_dim, num_layers):
    """Deterministic synthetic parameters.

    Weights are stored already-transposed relative to torch.nn.Linear,
    i.e. W has shape (in_features, out_features) so y = x @ W + b.
    """
    params = {"convs": [], "lin": None}
    dims_in = [input_dim] + [hidden_dim] * (num_layers - 1)
    for d_in in dims_in:
        key, k1, k2, k3, k4 = jax.random.split(key, 5)
        w1 = jax.random.normal(k1, (d_in, hidden_dim), jnp.float32) * 0.1
        b1 = jax.random.normal(k2, (1, hidden_dim), jnp.float32) * 0.1
        w2 = jax.random.normal(k3, (hidden_dim, hidden_dim), jnp.float32) * 0.1
        b2 = jax.random.normal(k4, (1, hidden_dim), jnp.float32) * 0.1
        params["convs"].append((w1, b1, w2, b2))
    key, k1, k2 = jax.random.split(key, 3)
    wl = jax.random.normal(k1, (hidden_dim, output_dim), jnp.float32) * 0.1
    bl = jax.random.normal(k2, (1, output_dim), jnp.float32) * 0.1
    params["lin"] = (wl, bl)
    return params


def pack_gin_params(params):
    """Zero-pad every weight to lane-dense [*, 128, 128] and stack per layer."""
    P = LANE

    def pad_w(w):
        return jnp.zeros((P, P), jnp.float32).at[:w.shape[0], :w.shape[1]].set(w)

    def pad_b(b):
        return jnp.zeros((1, P), jnp.float32).at[:, :b.shape[1]].set(b)

    w1s, b1s, w2s, b2s = [], [], [], []
    for (w1, b1, w2, b2) in params["convs"]:
        w1s.append(pad_w(w1))
        b1s.append(pad_b(b1))
        w2s.append(pad_w(w2))
        b2s.append(pad_b(b2))
    wl, bl = params["lin"]
    return {
        "w1": jnp.stack(w1s),            # [L, P, P]
        "b1": jnp.stack(b1s),            # [L, 1, P]
        "w2": jnp.stack(w2s),            # [L, P, P]
        "b2": jnp.stack(b2s),            # [L, 1, P]
        "wl": pad_w(wl),                 # [P, P]
        "bl": pad_b(bl),                 # [1, P]
    }


def edge_index_to_dense_adj(edge_index, num_nodes):
    """A[i, j] = number of edges (j -> i); matches PyG sum aggregation."""
    src = edge_index[0]
    dst = edge_index[1]
    adj = jnp.zeros((num_nodes, num_nodes), jnp.float32)
    adj = adj.at[dst, src].add(1.0)
    return adj


def build_adj_hat(edge_index, num_nodes, n_pad, eps=0.0):
    """A_hat = A + (1+eps)*I, zero-padded to n_pad and stored in bf16.

    Edge counts and (1+eps)=1 are exact in bf16, so aggregation is exact.
    """
    src = edge_index[0]
    dst = edge_index[1]
    adj = jnp.zeros((n_pad, n_pad), jnp.float32)
    adj = adj.at[dst, src].add(1.0)
    adj = adj + (1.0 + eps) * jnp.eye(n_pad, dtype=jnp.float32)
    return adj.astype(jnp.bfloat16)


def pad_features(x, n_pad):
    n, d = x.shape
    xp = jnp.zeros((n_pad, LANE), jnp.float32)
    return xp.at[:n, :d].set(x)


# ---------------------------------------------------------------------------
# Pure-JAX reference for a sanity check (unpadded, f32)
# ---------------------------------------------------------------------------

def gin_forward_ref(params, x, adj):
    for (w1, b1, w2, b2) in params["convs"]:
        h = x + adj @ x                      # (1 + eps) * x + neighbor sum, eps=0
        h = jnp.maximum(h @ w1 + b1, 0.0)    # Linear -> ReLU
        h = h @ w2 + b2                      # Linear
        x = jnp.maximum(h, 0.0)              # outer ReLU
    wl, bl = params["lin"]
    return x @ wl + bl


if __name__ == "__main__":
    # Small shapes: 16 nodes, 40 edges, input_dim=4, hidden_dim=32,
    # output_dim=8, num_layers=3.
    num_nodes = 16
    num_edges = 40
    input_dim, hidden_dim, output_dim, num_layers = 4, 32, 8, 3

    key = jax.random.PRNGKey(0)
    key, kx, ke_src, ke_dst, kp = jax.random.split(key, 5)

    x = jax.random.normal(kx, (num_nodes, input_dim), jnp.float32)
    src = jax.random.randint(ke_src, (num_edges,), 0, num_nodes, jnp.int32)
    dst = jax.random.randint(ke_dst, (num_edges,), 0, num_nodes, jnp.int32)
    edge_index = jnp.stack([src, dst], axis=0)  # [2, E]

    params = init_gin_params(kp, input_dim, hidden_dim, output_dim, num_layers)

    # Pack for the fused kernel: lane-dense padding + (1+eps) folded into A.
    n_pad = max(SUBLANE, _round_up(num_nodes, SUBLANE))
    packed = pack_gin_params(params)
    adj_hat = build_adj_hat(edge_index, num_nodes, n_pad, eps=0.0)
    x_pad = pad_features(x, n_pad)

    out = gin_forward(packed, x_pad, adj_hat,
                      num_layers=num_layers,
                      num_nodes=num_nodes,
                      output_dim=output_dim)
    out = jax.block_until_ready(out)

    adj_ref = edge_index_to_dense_adj(edge_index, num_nodes)
    ref = gin_forward_ref(params, x, adj_ref)

    assert out.shape == (num_nodes, output_dim)
    assert jnp.allclose(out, ref, atol=1e-4, rtol=1e-4), "mismatch vs reference"

    print("KERNEL_OK")
</pallas_src>

<mosaic_0001>
module attributes {stable_mosaic.version = 11 : i64} {
  func.func @_gin_fused_kernel(%arg0: memref<16x16xbf16, #tpu.memory_space<vmem>>, %arg1: memref<16x128xf32, #tpu.memory_space<vmem>>, %arg2: memref<3x128x128xf32, #tpu.memory_space<vmem>>, %arg3: memref<3x1x128xf32, #tpu.memory_space<vmem>>, %arg4: memref<3x128x128xf32, #tpu.memory_space<vmem>>, %arg5: memref<3x1x128xf32, #tpu.memory_space<vmem>>, %arg6: memref<128x128xf32, #tpu.memory_space<vmem>>, %arg7: memref<1x128xf32, #tpu.memory_space<vmem>>, %arg8: memref<16x128xf32, #tpu.memory_space<vmem>>) attributes {dimension_semantics = [], scalar_prefetch = 0 : i64, scratch_operands = 0 : i64, tpu.core_type = #tpu.core_type<tc>} {
    %c0 = arith.constant 0 : index
    %c0_0 = arith.constant 0 : index
    %0 = vector.load %arg0[%c0, %c0_0] : memref<16x16xbf16, #tpu.memory_space<vmem>>, vector<16x16xbf16>
    %1 = arith.extf %0 : vector<16x16xbf16> to vector<16x16xf32>
    %c0_1 = arith.constant 0 : index
    %c0_2 = arith.constant 0 : index
    %2 = vector.load %arg1[%c0_1, %c0_2] : memref<16x128xf32, #tpu.memory_space<vmem>>, vector<16x128xf32>
    %cst = arith.constant dense<0.000000e+00> : vector<16x128xf32>
    %3 = tpu.matmul %1, %2, %cst {dimension_numbers = #tpu.dot_dimension_numbers<[1], [0], [0], [1], [0, 0, 1, 1], [], []>} : vector<16x16xf32>, vector<16x128xf32>, vector<16x128xf32> -> vector<16x128xf32>
    %c0_3 = arith.constant 0 : index
    %c0_4 = arith.constant 0 : index
    %c0_5 = arith.constant 0 : index
    %4 = vector.load %arg2[%c0_3, %c0_4, %c0_5] : memref<3x128x128xf32, #tpu.memory_space<vmem>>, vector<1x128x128xf32>
    %5 = vector.shape_cast %4 : vector<1x128x128xf32> to vector<128x128xf32>
    %cst_6 = arith.constant dense<0.000000e+00> : vector<16x128xf32>
    %6 = tpu.matmul %3, %5, %cst_6 {dimension_numbers = #tpu.dot_dimension_numbers<[1], [0], [0], [1], [0, 0, 1, 1], [], []>} : vector<16x128xf32>, vector<128x128xf32>, vector<16x128xf32> -> vector<16x128xf32>
    %c0_7 = arith.constant 0 : index
    %c0_8 = arith.constant 0 : index
    %c0_9 = arith.constant 0 : index
    %7 = vector.load %arg3[%c0_7, %c0_8, %c0_9] : memref<3x1x128xf32, #tpu.memory_space<vmem>>, vector<1x1x128xf32>
    %8 = vector.shape_cast %7 : vector<1x1x128xf32> to vector<1x128xf32>
    %9 = vector.broadcast %8 : vector<1x128xf32> to vector<16x128xf32>
    %10 = arith.addf %6, %9 : vector<16x128xf32>
    %cst_10 = arith.constant 0.000000e+00 : f32
    %11 = vector.broadcast %cst_10 : f32 to vector<16x128xf32>
    %12 = arith.maximumf %10, %11 : vector<16x128xf32>
    %c0_11 = arith.constant 0 : index
    %c0_12 = arith.constant 0 : index
    %c0_13 = arith.constant 0 : index
    %13 = vector.load %arg4[%c0_11, %c0_12, %c0_13] : memref<3x128x128xf32, #tpu.memory_space<vmem>>, vector<1x128x128xf32>
    %14 = vector.shape_cast %13 : vector<1x128x128xf32> to vector<128x128xf32>
    %cst_14 = arith.constant dense<0.000000e+00> : vector<16x128xf32>
    %15 = tpu.matmul %12, %14, %cst_14 {dimension_numbers = #tpu.dot_dimension_numbers<[1], [0], [0], [1], [0, 0, 1, 1], [], []>} : vector<16x128xf32>, vector<128x128xf32>, vector<16x128xf32> -> vector<16x128xf32>
    %c0_15 = arith.constant 0 : index
    %c0_16 = arith.constant 0 : index
    %c0_17 = arith.constant 0 : index
    %16 = vector.load %arg5[%c0_15, %c0_16, %c0_17] : memref<3x1x128xf32, #tpu.memory_space<vmem>>, vector<1x1x128xf32>
    %17 = vector.shape_cast %16 : vector<1x1x128xf32> to vector<1x128xf32>
    %18 = vector.broadcast %17 : vector<1x128xf32> to vector<16x128xf32>
    %19 = arith.addf %15, %18 : vector<16x128xf32>
    %cst_18 = arith.constant 0.000000e+00 : f32
    %20 = vector.broadcast %cst_18 : f32 to vector<16x128xf32>
    %21 = arith.maximumf %19, %20 : vector<16x128xf32>
    %cst_19 = arith.constant dense<0.000000e+00> : vector<16x128xf32>
    %22 = tpu.matmul %1, %21, %cst_19 {dimension_numbers = #tpu.dot_dimension_numbers<[1], [0], [0], [1], [0, 0, 1, 1], [], []>} : vector<16x16xf32>, vector<16x128xf32>, vector<16x128xf32> -> vector<16x128xf32>
    %c1 = arith.constant 1 : index
    %c0_20 = arith.constant 0 : index
    %c0_21 = arith.constant 0 : index
    %23 = vector.load %arg2[%c1, %c0_20, %c0_21] : memref<3x128x128xf32, #tpu.memory_space<vmem>>, vector<1x128x128xf32>
    %24 = vector.shape_cast %23 : vector<1x128x128xf32> to vector<128x128xf32>
    %cst_22 = arith.constant dense<0.000000e+00> : vector<16x128xf32>
    %25 = tpu.matmul %22, %24, %cst_22 {dimension_numbers = #tpu.dot_dimension_numbers<[1], [0], [0], [1], [0, 0, 1, 1], [], []>} : vector<16x128xf32>, vector<128x128xf32>, vector<16x128xf32> -> vector<16x128xf32>
    %c1_23 = arith.constant 1 : index
    %c0_24 = arith.constant 0 : index
    %c0_25 = arith.constant 0 : index
    %26 = vector.load %arg3[%c1_23, %c0_24, %c0_25] : memref<3x1x128xf32, #tpu.memory_space<vmem>>, vector<1x1x128xf32>
    %27 = vector.shape_cast %26 : vector<1x1x128xf32> to vector<1x128xf32>
    %28 = vector.broadcast %27 : vector<1x128xf32> to vector<16x128xf32>
    %29 = arith.addf %25, %28 : vector<16x128xf32>
    %cst_26 = arith.constant 0.000000e+00 : f32
    %30 = vector.broadcast %cst_26 : f32 to vector<16x128xf32>
    %31 = arith.maximumf %29, %30 : vector<16x128xf32>
    %c1_27 = arith.constant 1 : index
    %c0_28 = arith.constant 0 : index
    %c0_29 = arith.constant 0 : index
    %32 = vector.load %arg4[%c1_27, %c0_28, %c0_29] : memref<3x128x128xf32, #tpu.memory_space<vmem>>, vector<1x128x128xf32>
    %33 = vector.shape_cast %32 : vector<1x128x128xf32> to vector<128x128xf32>
    %cst_30 = arith.constant dense<0.000000e+00> : vector<16x128xf32>
    %34 = tpu.matmul %31, %33, %cst_30 {dimension_numbers = #tpu.dot_dimension_numbers<[1], [0], [0], [1], [0, 0, 1, 1], [], []>} : vector<16x128xf32>, vector<128x128xf32>, vector<16x128xf32> -> vector<16x128xf32>
    %c1_31 = arith.constant 1 : index
    %c0_32 = arith.constant 0 : index
    %c0_33 = arith.constant 0 : index
    %35 = vector.load %arg5[%c1_31, %c0_32, %c0_33] : memref<3x1x128xf32, #tpu.memory_space<vmem>>, vector<1x1x128xf32>
    %36 = vector.shape_cast %35 : vector<1x1x128xf32> to vector<1x128xf32>
    %37 = vector.broadcast %36 : vector<1x128xf32> to vector<16x128xf32>
    %38 = arith.addf %34, %37 : vector<16x128xf32>
    %cst_34 = arith.constant 0.000000e+00 : f32
    %39 = vector.broadcast %cst_34 : f32 to vector<16x128xf32>
    %40 = arith.maximumf %38, %39 : vector<16x128xf32>
    %cst_35 = arith.constant dense<0.000000e+00> : vector<16x128xf32>
    %41 = tpu.matmul %1, %40, %cst_35 {dimension_numbers = #tpu.dot_dimension_numbers<[1], [0], [0], [1], [0, 0, 1, 1], [], []>} : vector<16x16xf32>, vector<16x128xf32>, vector<16x128xf32> -> vector<16x128xf32>
    %c2 = arith.constant 2 : index
    %c0_36 = arith.constant 0 : index
    %c0_37 = arith.constant 0 : index
    %42 = vector.load %arg2[%c2, %c0_36, %c0_37] : memref<3x128x128xf32, #tpu.memory_space<vmem>>, vector<1x128x128xf32>
    %43 = vector.shape_cast %42 : vector<1x128x128xf32> to vector<128x128xf32>
    %cst_38 = arith.constant dense<0.000000e+00> : vector<16x128xf32>
    %44 = tpu.matmul %41, %43, %cst_38 {dimension_numbers = #tpu.dot_dimension_numbers<[1], [0], [0], [1], [0, 0, 1, 1], [], []>} : vector<16x128xf32>, vector<128x128xf32>, vector<16x128xf32> -> vector<16x128xf32>
    %c2_39 = arith.constant 2 : index
    %c0_40 = arith.constant 0 : index
    %c0_41 = arith.constant 0 : index
    %45 = vector.load %arg3[%c2_39, %c0_40, %c0_41] : memref<3x1x128xf32, #tpu.memory_space<vmem>>, vector<1x1x128xf32>
    %46 = vector.shape_cast %45 : vector<1x1x128xf32> to vector<1x128xf32>
    %47 = vector.broadcast %46 : vector<1x128xf32> to vector<16x128xf32>
    %48 = arith.addf %44, %47 : vector<16x128xf32>
    %cst_42 = arith.constant 0.000000e+00 : f32
    %49 = vector.broadcast %cst_42 : f32 to vector<16x128xf32>
    %50 = arith.maximumf %48, %49 : vector<16x128xf32>
    %c2_43 = arith.constant 2 : index
    %c0_44 = arith.constant 0 : index
    %c0_45 = arith.constant 0 : index
    %51 = vector.load %arg4[%c2_43, %c0_44, %c0_45] : memref<3x128x128xf32, #tpu.memory_space<vmem>>, vector<1x128x128xf32>
    %52 = vector.shape_cast %51 : vector<1x128x128xf32> to vector<128x128xf32>
    %cst_46 = arith.constant dense<0.000000e+00> : vector<16x128xf32>
    %53 = tpu.matmul %50, %52, %cst_46 {dimension_numbers = #tpu.dot_dimension_numbers<[1], [0], [0], [1], [0, 0, 1, 1], [], []>} : vector<16x128xf32>, vector<128x128xf32>, vector<16x128xf32> -> vector<16x128xf32>
    %c2_47 = arith.constant 2 : index
    %c0_48 = arith.constant 0 : index
    %c0_49 = arith.constant 0 : index
    %54 = vector.load %arg5[%c2_47, %c0_48, %c0_49] : memref<3x1x128xf32, #tpu.memory_space<vmem>>, vector<1x1x128xf32>
    %55 = vector.shape_cast %54 : vector<1x1x128xf32> to vector<1x128xf32>
    %56 = vector.broadcast %55 : vector<1x128xf32> to vector<16x128xf32>
    %57 = arith.addf %53, %56 : vector<16x128xf32>
    %cst_50 = arith.constant 0.000000e+00 : f32
    %58 = vector.broadcast %cst_50 : f32 to vector<16x128xf32>
    %59 = arith.maximumf %57, %58 : vector<16x128xf32>
    %c0_51 = arith.constant 0 : index
    %c0_52 = arith.constant 0 : index
    %60 = vector.load %arg6[%c0_51, %c0_52] : memref<128x128xf32, #tpu.memory_space<vmem>>, vector<128x128xf32>
    %cst_53 = arith.constant dense<0.000000e+00> : vector<16x128xf32>
    %61 = tpu.matmul %59, %60, %cst_53 {dimension_numbers = #tpu.dot_dimension_numbers<[1], [0], [0], [1], [0, 0, 1, 1], [], []>} : vector<16x128xf32>, vector<128x128xf32>, vector<16x128xf32> -> vector<16x128xf32>
    %c0_54 = arith.constant 0 : index
    %c0_55 = arith.constant 0 : index
    %62 = vector.load %arg7[%c0_54, %c0_55] : memref<1x128xf32, #tpu.memory_space<vmem>>, vector<1x128xf32>
    %63 = vector.broadcast %62 : vector<1x128xf32> to vector<16x128xf32>
    %64 = arith.addf %61, %63 : vector<16x128xf32>
    %c0_56 = arith.constant 0 : index
    %c0_57 = arith.constant 0 : index
    %65 = vector.load %arg8[%c0_56, %c0_57] : memref<16x128xf32, #tpu.memory_space<vmem>>, vector<16x128xf32>
    tpu.vector_store %arg8[%c0_56, %c0_57], %64 {strides = array<i32>} : memref<16x128xf32, #tpu.memory_space<vmem>>, vector<16x128xf32>,
    return
  }
}

</mosaic_0001>

<llo_original>
// kernel: gin_forward.1
$region0: #{gin_forward.1}
  #allocation0 [shape = 'u32[]', space=smem, size = 0x4, offset = 0x4, fixed_abs, tag = 'smem constant byte address 0x4 - core index']
  #allocation1 [shape = 'u32[144,128]{1,0:T(1,128)}', space=vmem, size = 0x12000, scoped, tag = 'internal scratch']
  %s0 = inlined_call_operand.vmem [shape: bf16[16,16], index: 0, kind: input, shape index: {}]
  %s1 = inlined_call_operand.vmem [shape: f32[16,128], index: 1, kind: input, shape index: {}]
  %s2 = inlined_call_operand.hbm [shape: f32[3,128,128], index: 2, kind: input, shape index: {}]
  %s3 = inlined_call_operand.hbm [shape: f32[3,1,128], index: 3, kind: input, shape index: {}]
  %s4 = inlined_call_operand.hbm [shape: f32[3,128,128], index: 4, kind: input, shape index: {}]
  %s5 = inlined_call_operand.hbm [shape: f32[3,1,128], index: 5, kind: input, shape index: {}]
  %s6 = inlined_call_operand.hbm [shape: f32[128,128], index: 6, kind: input, shape index: {}]
  %s7 = inlined_call_operand.vmem [shape: f32[1,128], index: 7, kind: input, shape index: {}]
  %s8 = inlined_call_operand.vmem [shape: f32[16,128], index: 8, kind: output, shape index: {}]
  %s9 = sld [smem:[#allocation0]]
  $region62: #{gin_forward.1} parent=0
    _
  %s11 = ssub.s32 1, %s9
  %s12 = scalar_select 0, %s11, %s9
  $region1: #{gin_forward.1} parent=0
    #allocation2 [shape = 'u8[196608]{0}', space=vmem, size = 0x30000, scoped, tag = 'input window, operand 2, single buffered']
    #allocation3 [shape = 's32[1]{0}', space=sflag, size = 0x4, scoped, tag = 'scoped memory for gin_forward.1']
    #allocation4 [shape = 'u8[1536]{0}', space=vmem, size = 0x800, scoped, tag = 'input window, operand 3, single buffered']
    #allocation5 [shape = 's32[1]{0}', space=sflag, size = 0x4, scoped, tag = 'scoped memory for gin_forward.1']
    #allocation6 [shape = 'u8[196608]{0}', space=vmem, size = 0x30000, scoped, tag = 'input window, operand 4, single buffered']
    #allocation7 [shape = 'u8[1536]{0}', space=vmem, size = 0x800, scoped, tag = 'input window, operand 5, single buffered']
    #allocation8 [shape = 's32[1]{0}', space=sflag, size = 0x4, scoped, tag = 'scoped memory for gin_forward.1']
    #allocation9 [shape = 'u8[65536]{0}', space=vmem, size = 0x10000, scoped, tag = 'input window, operand 6, single buffered']
    %13 = vsyncpa [#allocation3], 0
    %14 = vsyncpa [#allocation5], 0
    %15 = vsyncpa [#allocation8], 0
    // Predicated region
    $region2: #{gin_forward.1} parent=1 // pred_check
      _
    $region3: #{gin_forward.1} parent=1 // pred_check_branch
      %17 = sbr.rel (0) target = $region5
    $region4: #{gin_forward.1} parent=1 // pred_region
      _
    $region5: #{gin_forward.1} parent=1 // pred_fallthru
      _
    // Predicated region
    $region6: #{gin_forward.1} parent=1 // pred_check
      _
    $region7: #{gin_forward.1} parent=1 // pred_check_branch
      %19 = sbr.rel (0) target = $region9
    $region8: #{gin_forward.1} parent=1 // pred_region
      _
    $region9: #{gin_forward.1} parent=1 // pred_fallthru
      _
    // Predicated region
    $region10: #{gin_forward.1} parent=1 // pred_check
      _
    $region11: #{gin_forward.1} parent=1 // pred_check_branch
      %21 = sbr.rel (0) target = $region13
    $region12: #{gin_forward.1} parent=1 // pred_region
      %s23 = ssub.s32 6144, 6144
      %24 = vsyncadd [#allocation3], %s23
      %s25 = sshll.u32 [#allocation2], 4
      %s26 = int_to_ptr.vmem [resolvable:$true] %s25
      %31 = dma.hbm_to_vmem [thread:$0]  %s2, 6144, %s26, [#allocation3], 128, 128, 8
    $region13: #{gin_forward.1} parent=1 // pred_fallthru
      _
    // Predicated region
    $region14: #{gin_forward.1} parent=1 // pred_check
      _
    $region15: #{gin_forward.1} parent=1 // pred_check_branch
      %33 = sbr.rel (0) target = $region17
    $region16: #{gin_forward.1} parent=1 // pred_region
      %s35 = ssub.s32 48, 48
      %36 = vsyncadd [#allocation5], %s35
      %s37 = sshll.u32 [#allocation4], 4
      %s38 = int_to_ptr.vmem [resolvable:$true] %s37
      %43 = dma.hbm_to_vmem [thread:$0]  %s3, 48, %s38, [#allocation5], 16, 16, 1
    $region17: #{gin_forward.1} parent=1 // pred_fallthru
      _
    // Predicated region
    $region18: #{gin_forward.1} parent=1 // pred_check
      _
    $region19: #{gin_forward.1} parent=1 // pred_check_branch
      %45 = sbr.rel (0) target = $region21
    $region20: #{gin_forward.1} parent=1 // pred_region
      %s47 = ssub.s32 6144, 6144
      %48 = vsyncadd [#allocation5], %s47
      %s49 = sshll.u32 [#allocation6], 4
      %s50 = int_to_ptr.vmem [resolvable:$true] %s49
      %55 = dma.hbm_to_vmem [thread:$0]  %s4, 6144, %s50, [#allocation5], 128, 128, 8
    $region21: #{gin_forward.1} parent=1 // pred_fallthru
      _
    // Predicated region
    $region22: #{gin_forward.1} parent=1 // pred_check
      _
    $region23: #{gin_forward.1} parent=1 // pred_check_branch
      %57 = sbr.rel (0) target = $region25
    $region24: #{gin_forward.1} parent=1 // pred_region
      %s59 = ssub.s32 48, 48
      %60 = vsyncadd [#allocation8], %s59
      %s61 = sshll.u32 [#allocation7], 4
      %s62 = int_to_ptr.vmem [resolvable:$true] %s61
      %67 = dma.hbm_to_vmem [thread:$0]  %s5, 48, %s62, [#allocation8], 16, 16, 1
    $region25: #{gin_forward.1} parent=1 // pred_fallthru
      _
    // Predicated region
    $region26: #{gin_forward.1} parent=1 // pred_check
      _
    $region27: #{gin_forward.1} parent=1 // pred_check_branch
      %69 = sbr.rel (0) target = $region29
    $region28: #{gin_forward.1} parent=1 // pred_region
      %s71 = ssub.s32 2048, 2048
      %72 = vsyncadd [#allocation8], %s71
      %s73 = sshll.u32 [#allocation9], 4
      %s74 = int_to_ptr.vmem [resolvable:$true] %s73
      %79 = dma.hbm_to_vmem [thread:$0]  %s6, 2048, %s74, [#allocation8], 128, 128, 8
    $region29: #{gin_forward.1} parent=1 // pred_fallthru
      _
    // Predicated region
    $region30: #{gin_forward.1} parent=1 // pred_check
      _
    $region31: #{gin_forward.1} parent=1 // pred_check_branch
      %81 = sbr.rel (0) target = $region33
    $region32: #{gin_forward.1} parent=1 // pred_region
      _
    $region33: #{gin_forward.1} parent=1 // pred_fallthru
      _
    // Predicated region
    $region34: #{gin_forward.1} parent=1 // pred_check
      _
    $region35: #{gin_forward.1} parent=1 // pred_check_branch
      %83 = sbr.rel (0) target = $region37
    $region36: #{gin_forward.1} parent=1 // pred_region
      %84 = dma.done [#allocation3], 6144
    $region37: #{gin_forward.1} parent=1 // pred_fallthru
      _
    // Predicated region
    $region38: #{gin_forward.1} parent=1 // pred_check
      _
    $region39: #{gin_forward.1} parent=1 // pred_check_branch
      %86 = sbr.rel (0) target = $region41
    $region40: #{gin_forward.1} parent=1 // pred_region
      %87 = dma.done [#allocation5], 48
    $region41: #{gin_forward.1} parent=1 // pred_fallthru
      _
    // Predicated region
    $region42: #{gin_forward.1} parent=1 // pred_check
      _
    $region43: #{gin_forward.1} parent=1 // pred_check_branch
      %89 = sbr.rel (0) target = $region45
    $region44: #{gin_forward.1} parent=1 // pred_region
      %90 = dma.done [#allocation5], 6144
    $region45: #{gin_forward.1} parent=1 // pred_fallthru
      _
    // Predicated region
    $region46: #{gin_forward.1} parent=1 // pred_check
      _
    $region47: #{gin_forward.1} parent=1 // pred_check_branch
      %92 = sbr.rel (0) target = $region49
    $region48: #{gin_forward.1} parent=1 // pred_region
      %93 = dma.done [#allocation8], 48
    $region49: #{gin_forward.1} parent=1 // pred_fallthru
      _
    // Predicated region
    $region50: #{gin_forward.1} parent=1 // pred_check
      _
    $region51: #{gin_forward.1} parent=1 // pred_check_branch
      %95 = sbr.rel (0) target = $region53
    $region52: #{gin_forward.1} parent=1 // pred_region
      %96 = dma.done [#allocation8], 2048
    $region53: #{gin_forward.1} parent=1 // pred_fallthru
      _
    %v97 = vld [vmem:[%s0] sm:$0xf]
    %v98 = vld [vmem:[%s0 + $0x4] sm:$0xf]
    %v99 = vunpack.c.l.bf16 %v97
    %v100 = vunpack.c.l.bf16 %v98
    %v101 = vld [vmem:[%s1] sm:$0xff]
    %v102 = vld [vmem:[%s1 + $0x8] sm:$0xff]
    %vm103 = vcmask 130048
    %v105 = vsel %vm103, %v99, 0
    %v108 = vsel %vm103, %v100, 0
    %110 = vmatprep.subr.mxu0 0.0
    %111 = vmatpush1.msra.mxu0 %v101
    %112 = vmatprep.subr.mxu0 0.0
    %113 = vmatpush1.msra.mxu0 %v102
    %114 = vmatprep.subr.mxu0 0.0
    %115 = vmatpush1.msra.mxu0 0.0
    %116 = vmatprep.subr.mxu0 0.0
    %117 = vmatpush1.msra.mxu0 0.0
    %118 = vmatprep.subr.mxu0 0.0
    %119 = vmatpush1.msra.mxu0 0.0
    %120 = vmatprep.subr.mxu0 0.0
    %121 = vmatpush1.msra.mxu0 0.0
    %122 = vmatprep.subr.mxu0 0.0
    %123 = vmatpush1.msra.mxu0 0.0
    %124 = vmatprep.subr.mxu0 0.0
    %125 = vmatpush1.msra.mxu0 0.0
    %126 = vmatprep.subr.mxu0 0.0
    %127 = vmatpush1.msra.mxu0 0.0
    %128 = vmatprep.subr.mxu0 0.0
    %129 = vmatpush1.msra.mxu0 0.0
    %130 = vmatprep.subr.mxu0 0.0
    %131 = vmatpush1.msra.mxu0 0.0
    %132 = vmatprep.subr.mxu0 0.0
    %133 = vmatpush1.msra.mxu0 0.0
    %134 = vmatprep.subr.mxu0 0.0
    %135 = vmatpush1.msra.mxu0 0.0
    %136 = vmatprep.subr.mxu0 0.0
    %137 = vmatpush1.msra.mxu0 0.0
    %138 = vmatprep.subr.mxu0 0.0
    %139 = vmatpush1.msra.mxu0 0.0
    %140 = vmatprep.subr.mxu0 0.0
    %141 = vmatpush1.msra.mxu0 0.0
    %142 = vmatprep.subr.mxu0 0.0
    %143 = vmatpush1.msra.mxu0 0.0
    %144 = vmatprep.subr.mxu0 0.0
    %145 = vmatpush1.msra.mxu0 0.0
    %146 = vmatprep.subr.mxu0 0.0
    %147 = vmatpush1.msra.mxu0 0.0
    %148 = vmatprep.subr.mxu0 0.0
    %149 = vmatpush1.msra.mxu0 0.0
    %150 = vmatprep.subr.mxu0 0.0
    %151 = vmatpush1.msra.mxu0 0.0
    %152 = vmatprep.subr.mxu0 0.0
    %153 = vmatpush1.msra.mxu0 0.0
    %154 = vmatprep.subr.mxu0 0.0
    %155 = vmatpush1.msra.mxu0 0.0
    %156 = vmatprep.subr.mxu0 0.0
    %157 = vmatpush1.msra.mxu0 0.0
    %158 = vmatprep.subr.mxu0 0.0
    %159 = vmatpush1.msra.mxu0 0.0
    %160 = vmatprep.subr.mxu0 0.0
    %161 = vmatpush1.msra.mxu0 0.0
    %162 = vmatprep.subr.mxu0 0.0
    %163 = vmatpush1.msra.mxu0 0.0
    %164 = vmatprep.subr.mxu0 0.0
    %165 = vmatpush1.msra.mxu0 0.0
    %166 = vmatprep.subr.mxu0 0.0
    %167 = vmatpush1.msra.mxu0 0.0
    %168 = vmatprep.subr.mxu0 0.0
    %169 = vmatpush1.msra.mxu0 0.0
    %170 = vmatprep.subr.mxu0 0.0
    %171 = vmatpush1.msra.mxu0 0.0
    %172 = vmatprep.subr.mxu0 0.0
    %173 = vmatpush1.msra.mxu0 0.0
    %174 = vmatprep.mubr.f32.mxu0 0.0
    %175 = vmatmul.mubr.f32.gmra.mrb[0].mxu0 %v105
    %v176 = vpop.f32.mrb[0].mxu0
    %v177 = vadd.f32 0.0, %v176
    %v178 = vpop.f32.mrb[0].mxu0
    %179 = vmatprep.mubr.f32.mxu0 0.0
    %180 = vmatmul.mubr.f32.gmra.mrb[0].mxu0 %v108
    %v181 = vpop.f32.mrb[0].mxu0
    %v182 = vadd.f32 0.0, %v181
    %v183 = vpop.f32.mrb[0].mxu0
    %184 = vdwg.mxu0
    %v185 = vld [vmem:[#allocation2] sm:$0xff]
    %v186 = vld [vmem:[#allocation2 + $0x8] sm:$0xff]
    %v187 = vld [vmem:[#allocation2 + $0x10] sm:$0xff]
    %v188 = vld [vmem:[#allocation2 + $0x18] sm:$0xff]
    %v189 = vld [vmem:[#allocation2 + $0x20] sm:$0xff]
    %v190 = vld [vmem:[#allocation2 + $0x28] sm:$0xff]
    %v191 = vld [vmem:[#allocation2 + $0x30] sm:$0xff]
    %v192 = vld [vmem:[#allocation2 + $0x38] sm:$0xff]
    %v193 = vld [vmem:[#allocation2 + $0x40] sm:$0xff]
    %v194 = vld [vmem:[#allocation2 + $0x48] sm:$0xff]
    %v195 = vld [vmem:[#allocation2 + $0x50] sm:$0xff]
    %v196 = vld [vmem:[#allocation2 + $0x58] sm:$0xff]
    %v197 = vld [vmem:[#allocation2 + $0x60] sm:$0xff]
    %v198 = vld [vmem:[#allocation2 + $0x68] sm:$0xff]
    %v199 = vld [vmem:[#allocation2 + $0x70] sm:$0xff]
    %v200 = vld [vmem:[#allocation2 + $0x78] sm:$0xff]
    %v201 = vld [vmem:[#allocation4] sm:$0x1]
    %v203 = vlaneseq
    %v204 = vshrl.u32 %v203, 7
    %v205 = vsub.s32 0, %v204
    %v206 = vrot.slane %v201, %v205
    %208 = vmatprep.subr.mxu0 0.0
    %209 = vmatpush1.msra.mxu0 %v185
    %210 = vmatprep.subr.mxu0 0.0
    %211 = vmatpush1.msra.mxu0 %v186
    %212 = vmatprep.subr.mxu0 0.0
    %213 = vmatpush1.msra.mxu0 %v187
    %214 = vmatprep.subr.mxu0 0.0
    %215 = vmatpush1.msra.mxu0 %v188
    %216 = vmatprep.subr.mxu0 0.0
    %217 = vmatpush1.msra.mxu0 %v189
    %218 = vmatprep.subr.mxu0 0.0
    %219 = vmatpush1.msra.mxu0 %v190
    %220 = vmatprep.subr.mxu0 0.0
    %221 = vmatpush1.msra.mxu0 %v191
    %222 = vmatprep.subr.mxu0 0.0
    %223 = vmatpush1.msra.mxu0 %v192
    %224 = vmatprep.subr.mxu0 0.0
    %225 = vmatpush1.msra.mxu0 %v193
    %226 = vmatprep.subr.mxu0 0.0
    %227 = vmatpush1.msra.mxu0 %v194
    %228 = vmatprep.subr.mxu0 0.0
    %229 = vmatpush1.msra.mxu0 %v195
    %230 = vmatprep.subr.mxu0 0.0
    %231 = vmatpush1.msra.mxu0 %v196
    %232 = vmatprep.subr.mxu0 0.0
    %233 = vmatpush1.msra.mxu0 %v197
    %234 = vmatprep.subr.mxu0 0.0
    %235 = vmatpush1.msra.mxu0 %v198
    %236 = vmatprep.subr.mxu0 0.0
    %237 = vmatpush1.msra.mxu0 %v199
    %238 = vmatprep.subr.mxu0 0.0
    %239 = vmatpush1.msra.mxu0 %v200
    %240 = vmatprep.subr.mxu0 0.0
    %241 = vmatpush1.msra.mxu0 0.0
    %242 = vmatprep.subr.mxu0 0.0
    %243 = vmatpush1.msra.mxu0 0.0
    %244 = vmatprep.subr.mxu0 0.0
    %245 = vmatpush1.msra.mxu0 0.0
    %246 = vmatprep.subr.mxu0 0.0
    %247 = vmatpush1.msra.mxu0 0.0
    %248 = vmatprep.subr.mxu0 0.0
    %249 = vmatpush1.msra.mxu0 0.0
    %250 = vmatprep.subr.mxu0 0.0
    %251 = vmatpush1.msra.mxu0 0.0
    %252 = vmatprep.subr.mxu0 0.0
    %253 = vmatpush1.msra.mxu0 0.0
    %254 = vmatprep.subr.mxu0 0.0
    %255 = vmatpush1.msra.mxu0 0.0
    %256 = vmatprep.subr.mxu0 0.0
    %257 = vmatpush1.msra.mxu0 0.0
    %258 = vmatprep.subr.mxu0 0.0
    %259 = vmatpush1.msra.mxu0 0.0
    %260 = vmatprep.subr.mxu0 0.0
    %261 = vmatpush1.msra.mxu0 0.0
    %262 = vmatprep.subr.mxu0 0.0
    %263 = vmatpush1.msra.mxu0 0.0
    %264 = vmatprep.subr.mxu0 0.0
    %265 = vmatpush1.msra.mxu0 0.0
    %266 = vmatprep.subr.mxu0 0.0
    %267 = vmatpush1.msra.mxu0 0.0
    %268 = vmatprep.subr.mxu0 0.0
    %269 = vmatpush1.msra.mxu0 0.0
    %270 = vmatprep.subr.mxu0 0.0
    %271 = vmatpush1.msra.mxu0 0.0
    %272 = vmatprep.mubr.f32.mxu0 0.0
    %273 = vmatmul.mubr.f32.gmra.mrb[0].mxu0 %v177
    %v274 = vpop.f32.mrb[0].mxu0
    %v275 = vadd.f32 %v206, %v274
    %v276 = vpop.f32.mrb[0].mxu0
    %277 = vmatprep.mubr.f32.mxu0 0.0
    %278 = vmatmul.mubr.f32.gmra.mrb[0].mxu0 %v182
    %v279 = vpop.f32.mrb[0].mxu0
    %v280 = vadd.f32 %v206, %v279
    %v281 = vpop.f32.mrb[0].mxu0
    %282 = vdwg.mxu0
    %v283 = vmax.f32 %v275, 0.0
    %v284 = vmax.f32 %v280, 0.0
    %v285 = vld [vmem:[#allocation6] sm:$0xff]
    %v286 = vld [vmem:[#allocation6 + $0x8] sm:$0xff]
    %v287 = vld [vmem:[#allocation6 + $0x10] sm:$0xff]
    %v288 = vld [vmem:[#allocation6 + $0x18] sm:$0xff]
    %v289 = vld [vmem:[#allocation6 + $0x20] sm:$0xff]
    %v290 = vld [vmem:[#allocation6 + $0x28] sm:$0xff]
    %v291 = vld [vmem:[#allocation6 + $0x30] sm:$0xff]
    %v292 = vld [vmem:[#allocation6 + $0x38] sm:$0xff]
    %v293 = vld [vmem:[#allocation6 + $0x40] sm:$0xff]
    %v294 = vld [vmem:[#allocation6 + $0x48] sm:$0xff]
    %v295 = vld [vmem:[#allocation6 + $0x50] sm:$0xff]
    %v296 = vld [vmem:[#allocation6 + $0x58] sm:$0xff]
    %v297 = vld [vmem:[#allocation6 + $0x60] sm:$0xff]
    %v298 = vld [vmem:[#allocation6 + $0x68] sm:$0xff]
    %v299 = vld [vmem:[#allocation6 + $0x70] sm:$0xff]
    %v300 = vld [vmem:[#allocation6 + $0x78] sm:$0xff]
    %v301 = vld [vmem:[#allocation7] sm:$0x1]
    %v303 = vlaneseq
    %v304 = vshrl.u32 %v303, 7
    %v305 = vsub.s32 0, %v304
    %v306 = vrot.slane %v301, %v305
    %308 = vmatprep.subr.mxu0 0.0
    %309 = vmatpush1.msra.mxu0 %v285
    %310 = vmatprep.subr.mxu0 0.0
    %311 = vmatpush1.msra.mxu0 %v286
    %312 = vmatprep.subr.mxu0 0.0
    %313 = vmatpush1.msra.mxu0 %v287
    %314 = vmatprep.subr.mxu0 0.0
    %315 = vmatpush1.msra.mxu0 %v288
    %316 = vmatprep.subr.mxu0 0.0
    %317 = vmatpush1.msra.mxu0 %v289
    %318 = vmatprep.subr.mxu0 0.0
    %319 = vmatpush1.msra.mxu0 %v290
    %320 = vmatprep.subr.mxu0 0.0
    %321 = vmatpush1.msra.mxu0 %v291
    %322 = vmatprep.subr.mxu0 0.0
    %323 = vmatpush1.msra.mxu0 %v292
    %324 = vmatprep.subr.mxu0 0.0
    %325 = vmatpush1.msra.mxu0 %v293
    %326 = vmatprep.subr.mxu0 0.0
    %327 = vmatpush1.msra.mxu0 %v294
    %328 = vmatprep.subr.mxu0 0.0
    %329 = vmatpush1.msra.mxu0 %v295
    %330 = vmatprep.subr.mxu0 0.0
    %331 = vmatpush1.msra.mxu0 %v296
    %332 = vmatprep.subr.mxu0 0.0
    %333 = vmatpush1.msra.mxu0 %v297
    %334 = vmatprep.subr.mxu0 0.0
    %335 = vmatpush1.msra.mxu0 %v298
    %336 = vmatprep.subr.mxu0 0.0
    %337 = vmatpush1.msra.mxu0 %v299
    %338 = vmatprep.subr.mxu0 0.0
    %339 = vmatpush1.msra.mxu0 %v300
    %340 = vmatprep.subr.mxu0 0.0
    %341 = vmatpush1.msra.mxu0 0.0
    %342 = vmatprep.subr.mxu0 0.0
    %343 = vmatpush1.msra.mxu0 0.0
    %344 = vmatprep.subr.mxu0 0.0
    %345 = vmatpush1.msra.mxu0 0.0
    %346 = vmatprep.subr.mxu0 0.0
    %347 = vmatpush1.msra.mxu0 0.0
    %348 = vmatprep.subr.mxu0 0.0
    %349 = vmatpush1.msra.mxu0 0.0
    %350 = vmatprep.subr.mxu0 0.0
    %351 = vmatpush1.msra.mxu0 0.0
    %352 = vmatprep.subr.mxu0 0.0
    %353 = vmatpush1.msra.mxu0 0.0
    %354 = vmatprep.subr.mxu0 0.0
    %355 = vmatpush1.msra.mxu0 0.0
    %356 = vmatprep.subr.mxu0 0.0
    %357 = vmatpush1.msra.mxu0 0.0
    %358 = vmatprep.subr.mxu0 0.0
    %359 = vmatpush1.msra.mxu0 0.0
    %360 = vmatprep.subr.mxu0 0.0
    %361 = vmatpush1.msra.mxu0 0.0
    %362 = vmatprep.subr.mxu0 0.0
    %363 = vmatpush1.msra.mxu0 0.0
    %364 = vmatprep.subr.mxu0 0.0
    %365 = vmatpush1.msra.mxu0 0.0
    %366 = vmatprep.subr.mxu0 0.0
    %367 = vmatpush1.msra.mxu0 0.0
    %368 = vmatprep.subr.mxu0 0.0
    %369 = vmatpush1.msra.mxu0 0.0
    %370 = vmatprep.subr.mxu0 0.0
    %371 = vmatpush1.msra.mxu0 0.0
    %372 = vmatprep.mubr.f32.mxu0 0.0
    %373 = vmatmul.mubr.f32.gmra.mrb[0].mxu0 %v283
    %v374 = vpop.f32.mrb[0].mxu0
    %v375 = vadd.f32 %v306, %v374
    %v376 = vpop.f32.mrb[0].mxu0
    %377 = vmatprep.mubr.f32.mxu0 0.0
    %378 = vmatmul.mubr.f32.gmra.mrb[0].mxu0 %v284
    %v379 = vpop.f32.mrb[0].mxu0
    %v380 = vadd.f32 %v306, %v379
    %v381 = vpop.f32.mrb[0].mxu0
    %382 = vdwg.mxu0
    %v383 = vmax.f32 %v375, 0.0
    %v384 = vmax.f32 %v380, 0.0
    %385 = vmatprep.subr.mxu0 0.0
    %386 = vmatpush1.msra.mxu0 %v383
    %387 = vmatprep.subr.mxu0 0.0
    %388 = vmatpush1.msra.mxu0 %v384
    %389 = vmatprep.subr.mxu0 0.0
    %390 = vmatpush1.msra.mxu0 0.0
    %391 = vmatprep.subr.mxu0 0.0
    %392 = vmatpush1.msra.mxu0 0.0
    %393 = vmatprep.subr.mxu0 0.0
    %394 = vmatpush1.msra.mxu0 0.0
    %395 = vmatprep.subr.mxu0 0.0
    %396 = vmatpush1.msra.mxu0 0.0
    %397 = vmatprep.subr.mxu0 0.0
    %398 = vmatpush1.msra.mxu0 0.0
    %399 = vmatprep.subr.mxu0 0.0
    %400 = vmatpush1.msra.mxu0 0.0
    %401 = vmatprep.subr.mxu0 0.0
    %402 = vmatpush1.msra.mxu0 0.0
    %403 = vmatprep.subr.mxu0 0.0
    %404 = vmatpush1.msra.mxu0 0.0
    %405 = vmatprep.subr.mxu0 0.0
    %406 = vmatpush1.msra.mxu0 0.0
    %407 = vmatprep.subr.mxu0 0.0
    %408 = vmatpush1.msra.mxu0 0.0
    %409 = vmatprep.subr.mxu0 0.0
    %410 = vmatpush1.msra.mxu0 0.0
    %411 = vmatprep.subr.mxu0 0.0
    %412 = vmatpush1.msra.mxu0 0.0
    %413 = vmatprep.subr.mxu0 0.0
    %414 = vmatpush1.msra.mxu0 0.0
    %415 = vmatprep.subr.mxu0 0.0
    %416 = vmatpush1.msra.mxu0 0.0
    %417 = vmatprep.subr.mxu0 0.0
    %418 = vmatpush1.msra.mxu0 0.0
    %419 = vmatprep.subr.mxu0 0.0
    %420 = vmatpush1.msra.mxu0 0.0
    %421 = vmatprep.subr.mxu0 0.0
    %422 = vmatpush1.msra.mxu0 0.0
    %423 = vmatprep.subr.mxu0 0.0
    %424 = vmatpush1.msra.mxu0 0.0
    %425 = vmatprep.subr.mxu0 0.0
    %426 = vmatpush1.msra.mxu0 0.0
    %427 = vmatprep.subr.mxu0 0.0
    %428 = vmatpush1.msra.mxu0 0.0
    %429 = vmatprep.subr.mxu0 0.0
    %430 = vmatpush1.msra.mxu0 0.0
    %431 = vmatprep.subr.mxu0 0.0
    %432 = vmatpush1.msra.mxu0 0.0
    %433 = vmatprep.subr.mxu0 0.0
    %434 = vmatpush1.msra.mxu0 0.0
    %435 = vmatprep.subr.mxu0 0.0
    %436 = vmatpush1.msra.mxu0 0.0
    %437 = vmatprep.subr.mxu0 0.0
    %438 = vmatpush1.msra.mxu0 0.0
    %439 = vmatprep.subr.mxu0 0.0
    %440 = vmatpush1.msra.mxu0 0.0
    %441 = vmatprep.subr.mxu0 0.0
    %442 = vmatpush1.msra.mxu0 0.0
    %443 = vmatprep.subr.mxu0 0.0
    %444 = vmatpush1.msra.mxu0 0.0
    %445 = vmatprep.subr.mxu0 0.0
    %446 = vmatpush1.msra.mxu0 0.0
    %447 = vmatprep.subr.mxu0 0.0
    %448 = vmatpush1.msra.mxu0 0.0
    %449 = vmatprep.mubr.f32.mxu0 0.0
    %450 = vmatmul.mubr.f32.gmra.mrb[0].mxu0 %v105
    %v451 = vpop.f32.mrb[0].mxu0
    %v452 = vadd.f32 0.0, %v451
    %v453 = vpop.f32.mrb[0].mxu0
    %454 = vmatprep.mubr.f32.mxu0 0.0
    %455 = vmatmul.mubr.f32.gmra.mrb[0].mxu0 %v108
    %v456 = vpop.f32.mrb[0].mxu0
    %v457 = vadd.f32 0.0, %v456
    %v458 = vpop.f32.mrb[0].mxu0
    %459 = vdwg.mxu0
    %s460 = scalar_lea.vmem [#allocation2], 128
    %v461 = vld [vmem:[%s460] sm:$0xff]
    %v462 = vld [vmem:[%s460 + $0x8] sm:$0xff]
    %v463 = vld [vmem:[%s460 + $0x10] sm:$0xff]
    %v464 = vld [vmem:[%s460 + $0x18] sm:$0xff]
    %v465 = vld [vmem:[%s460 + $0x20] sm:$0xff]
    %v466 = vld [vmem:[%s460 + $0x28] sm:$0xff]
    %v467 = vld [vmem:[%s460 + $0x30] sm:$0xff]
    %v468 = vld [vmem:[%s460 + $0x38] sm:$0xff]
    %v469 = vld [vmem:[%s460 + $0x40] sm:$0xff]
    %v470 = vld [vmem:[%s460 + $0x48] sm:$0xff]
    %v471 = vld [vmem:[%s460 + $0x50] sm:$0xff]
    %v472 = vld [vmem:[%s460 + $0x58] sm:$0xff]
    %v473 = vld [vmem:[%s460 + $0x60] sm:$0xff]
    %v474 = vld [vmem:[%s460 + $0x68] sm:$0xff]
    %v475 = vld [vmem:[%s460 + $0x70] sm:$0xff]
    %v476 = vld [vmem:[%s460 + $0x78] sm:$0xff]
    %s477 = scalar_lea.vmem [#allocation4], 1
    %v478 = vld [vmem:[%s477] sm:$0x1]
    %v480 = vlaneseq
    %v481 = vshrl.u32 %v480, 7
    %v482 = vsub.s32 0, %v481
    %v483 = vrot.slane %v478, %v482
    %485 = vmatprep.subr.mxu0 0.0
    %486 = vmatpush1.msra.mxu0 %v461
    %487 = vmatprep.subr.mxu0 0.0
    %488 = vmatpush1.msra.mxu0 %v462
    %489 = vmatprep.subr.mxu0 0.0
    %490 = vmatpush1.msra.mxu0 %v463
    %491 = vmatprep.subr.mxu0 0.0
    %492 = vmatpush1.msra.mxu0 %v464
    %493 = vmatprep.subr.mxu0 0.0
    %494 = vmatpush1.msra.mxu0 %v465
    %495 = vmatprep.subr.mxu0 0.0
    %496 = vmatpush1.msra.mxu0 %v466
    %497 = vmatprep.subr.mxu0 0.0
    %498 = vmatpush1.msra.mxu0 %v467
    %499 = vmatprep.subr.mxu0 0.0
    %500 = vmatpush1.msra.mxu0 %v468
    %501 = vmatprep.subr.mxu0 0.0
    %502 = vmatpush1.msra.mxu0 %v469
    %503 = vmatprep.subr.mxu0 0.0
    %504 = vmatpush1.msra.mxu0 %v470
    %505 = vmatprep.subr.mxu0 0.0
    %506 = vmatpush1.msra.mxu0 %v471
    %507 = vmatprep.subr.mxu0 0.0
    %508 = vmatpush1.msra.mxu0 %v472
    %509 = vmatprep.subr.mxu0 0.0
    %510 = vmatpush1.msra.mxu0 %v473
    %511 = vmatprep.subr.mxu0 0.0
    %512 = vmatpush1.msra.mxu0 %v474
    %513 = vmatprep.subr.mxu0 0.0
    %514 = vmatpush1.msra.mxu0 %v475
    %515 = vmatprep.subr.mxu0 0.0
    %516 = vmatpush1.msra.mxu0 %v476
    %517 = vmatprep.subr.mxu0 0.0
    %518 = vmatpush1.msra.mxu0 0.0
    %519 = vmatprep.subr.mxu0 0.0
    %520 = vmatpush1.msra.mxu0 0.0
    %521 = vmatprep.subr.mxu0 0.0
    %522 = vmatpush1.msra.mxu0 0.0
    %523 = vmatprep.subr.mxu0 0.0
    %524 = vmatpush1.msra.mxu0 0.0
    %525 = vmatprep.subr.mxu0 0.0
    %526 = vmatpush1.msra.mxu0 0.0
    %527 = vmatprep.subr.mxu0 0.0
    %528 = vmatpush1.msra.mxu0 0.0
    %529 = vmatprep.subr.mxu0 0.0
    %530 = vmatpush1.msra.mxu0 0.0
    %531 = vmatprep.subr.mxu0 0.0
    %532 = vmatpush1.msra.mxu0 0.0
    %533 = vmatprep.subr.mxu0 0.0
    %534 = vmatpush1.msra.mxu0 0.0
    %535 = vmatprep.subr.mxu0 0.0
    %536 = vmatpush1.msra.mxu0 0.0
    %537 = vmatprep.subr.mxu0 0.0
    %538 = vmatpush1.msra.mxu0 0.0
    %539 = vmatprep.subr.mxu0 0.0
    %540 = vmatpush1.msra.mxu0 0.0
    %541 = vmatprep.subr.mxu0 0.0
    %542 = vmatpush1.msra.mxu0 0.0
    %543 = vmatprep.subr.mxu0 0.0
    %544 = vmatpush1.msra.mxu0 0.0
    %545 = vmatprep.subr.mxu0 0.0
    %546 = vmatpush1.msra.mxu0 0.0
    %547 = vmatprep.subr.mxu0 0.0
    %548 = vmatpush1.msra.mxu0 0.0
    %549 = vmatprep.mubr.f32.mxu0 0.0
    %550 = vmatmul.mubr.f32.gmra.mrb[0].mxu0 %v452
    %v551 = vpop.f32.mrb[0].mxu0
    %v552 = vadd.f32 %v483, %v551
    %v553 = vpop.f32.mrb[0].mxu0
    %554 = vmatprep.mubr.f32.mxu0 0.0
    %555 = vmatmul.mubr.f32.gmra.mrb[0].mxu0 %v457
    %v556 = vpop.f32.mrb[0].mxu0
    %v557 = vadd.f32 %v483, %v556
    %v558 = vpop.f32.mrb[0].mxu0
    %559 = vdwg.mxu0
    %v560 = vmax.f32 %v552, 0.0
    %v561 = vmax.f32 %v557, 0.0
    %s562 = scalar_lea.vmem [#allocation6], 128
    %v563 = vld [vmem:[%s562] sm:$0xff]
    %v564 = vld [vmem:[%s562 + $0x8] sm:$0xff]
    %v565 = vld [vmem:[%s562 + $0x10] sm:$0xff]
    %v566 = vld [vmem:[%s562 + $0x18] sm:$0xff]
    %v567 = vld [vmem:[%s562 + $0x20] sm:$0xff]
    %v568 = vld [vmem:[%s562 + $0x28] sm:$0xff]
    %v569 = vld [vmem:[%s562 + $0x30] sm:$0xff]
    %v570 = vld [vmem:[%s562 + $0x38] sm:$0xff]
    %v571 = vld [vmem:[%s562 + $0x40] sm:$0xff]
    %v572 = vld [vmem:[%s562 + $0x48] sm:$0xff]
    %v573 = vld [vmem:[%s562 + $0x50] sm:$0xff]
    %v574 = vld [vmem:[%s562 + $0x58] sm:$0xff]
    %v575 = vld [vmem:[%s562 + $0x60] sm:$0xff]
    %v576 = vld [vmem:[%s562 + $0x68] sm:$0xff]
    %v577 = vld [vmem:[%s562 + $0x70] sm:$0xff]
    %v578 = vld [vmem:[%s562 + $0x78] sm:$0xff]
    %s579 = scalar_lea.vmem [#allocation7], 1
    %v580 = vld [vmem:[%s579] sm:$0x1]
    %v582 = vlaneseq
    %v583 = vshrl.u32 %v582, 7
    %v584 = vsub.s32 0, %v583
    %v585 = vrot.slane %v580, %v584
    %587 = vmatprep.subr.mxu0 0.0
    %588 = vmatpush1.msra.mxu0 %v563
    %589 = vmatprep.subr.mxu0 0.0
    %590 = vmatpush1.msra.mxu0 %v564
    %591 = vmatprep.subr.mxu0 0.0
    %592 = vmatpush1.msra.mxu0 %v565
    %593 = vmatprep.subr.mxu0 0.0
    %594 = vmatpush1.msra.mxu0 %v566
    %595 = vmatprep.subr.mxu0 0.0
    %596 = vmatpush1.msra.mxu0 %v567
    %597 = vmatprep.subr.mxu0 0.0
    %598 = vmatpush1.msra.mxu0 %v568
    %599 = vmatprep.subr.mxu0 0.0
    %600 = vmatpush1.msra.mxu0 %v569
    %601 = vmatprep.subr.mxu0 0.0
    %602 = vmatpush1.msra.mxu0 %v570
    %603 = vmatprep.subr.mxu0 0.0
    %604 = vmatpush1.msra.mxu0 %v571
    %605 = vmatprep.subr.mxu0 0.0
    %606 = vmatpush1.msra.mxu0 %v572
    %607 = vmatprep.subr.mxu0 0.0
    %608 = vmatpush1.msra.mxu0 %v573
    %609 = vmatprep.subr.mxu0 0.0
    %610 = vmatpush1.msra.mxu0 %v574
    %611 = vmatprep.subr.mxu0 0.0
    %612 = vmatpush1.msra.mxu0 %v575
    %613 = vmatprep.subr.mxu0 0.0
    %614 = vmatpush1.msra.mxu0 %v576
    %615 = vmatprep.subr.mxu0 0.0
    %616 = vmatpush1.msra.mxu0 %v577
    %617 = vmatprep.subr.mxu0 0.0
    %618 = vmatpush1.msra.mxu0 %v578
    %619 = vmatprep.subr.mxu0 0.0
    %620 = vmatpush1.msra.mxu0 0.0
    %621 = vmatprep.subr.mxu0 0.0
    %622 = vmatpush1.msra.mxu0 0.0
    %623 = vmatprep.subr.mxu0 0.0
    %624 = vmatpush1.msra.mxu0 0.0
    %625 = vmatprep.subr.mxu0 0.0
    %626 = vmatpush1.msra.mxu0 0.0
    %627 = vmatprep.subr.mxu0 0.0
    %628 = vmatpush1.msra.mxu0 0.0
    %629 = vmatprep.subr.mxu0 0.0
    %630 = vmatpush1.msra.mxu0 0.0
    %631 = vmatprep.subr.mxu0 0.0
    %632 = vmatpush1.msra.mxu0 0.0
    %633 = vmatprep.subr.mxu0 0.0
    %634 = vmatpush1.msra.mxu0 0.0
    %635 = vmatprep.subr.mxu0 0.0
    %636 = vmatpush1.msra.mxu0 0.0
    %637 = vmatprep.subr.mxu0 0.0
    %638 = vmatpush1.msra.mxu0 0.0
    %639 = vmatprep.subr.mxu0 0.0
    %640 = vmatpush1.msra.mxu0 0.0
    %641 = vmatprep.subr.mxu0 0.0
    %642 = vmatpush1.msra.mxu0 0.0
    %643 = vmatprep.subr.mxu0 0.0
    %644 = vmatpush1.msra.mxu0 0.0
    %645 = vmatprep.subr.mxu0 0.0
    %646 = vmatpush1.msra.mxu0 0.0
    %647 = vmatprep.subr.mxu0 0.0
    %648 = vmatpush1.msra.mxu0 0.0
    %649 = vmatprep.subr.mxu0 0.0
    %650 = vmatpush1.msra.mxu0 0.0
    %651 = vmatprep.mubr.f32.mxu0 0.0
    %652 = vmatmul.mubr.f32.gmra.mrb[0].mxu0 %v560
    %v653 = vpop.f32.mrb[0].mxu0
    %v654 = vadd.f32 %v585, %v653
    %v655 = vpop.f32.mrb[0].mxu0
    %656 = vmatprep.mubr.f32.mxu0 0.0
    %657 = vmatmul.mubr.f32.gmra.mrb[0].mxu0 %v561
    %v658 = vpop.f32.mrb[0].mxu0
    %v659 = vadd.f32 %v585, %v658
    %v660 = vpop.f32.mrb[0].mxu0
    %661 = vdwg.mxu0
    %v662 = vmax.f32 %v654, 0.0
    %v663 = vmax.f32 %v659, 0.0
    %664 = vmatprep.subr.mxu0 0.0
    %665 = vmatpush1.msra.mxu0 %v662
    %666 = vmatprep.subr.mxu0 0.0
    %667 = vmatpush1.msra.mxu0 %v663
    %668 = vmatprep.subr.mxu0 0.0
    %669 = vmatpush1.msra.mxu0 0.0
    %670 = vmatprep.subr.mxu0 0.0
    %671 = vmatpush1.msra.mxu0 0.0
    %672 = vmatprep.subr.mxu0 0.0
    %673 = vmatpush1.msra.mxu0 0.0
    %674 = vmatprep.subr.mxu0 0.0
    %675 = vmatpush1.msra.mxu0 0.0
    %676 = vmatprep.subr.mxu0 0.0
    %677 = vmatpush1.msra.mxu0 0.0
    %678 = vmatprep.subr.mxu0 0.0
    %679 = vmatpush1.msra.mxu0 0.0
    %680 = vmatprep.subr.mxu0 0.0
    %681 = vmatpush1.msra.mxu0 0.0
    %682 = vmatprep.subr.mxu0 0.0
    %683 = vmatpush1.msra.mxu0 0.0
    %684 = vmatprep.subr.mxu0 0.0
    %685 = vmatpush1.msra.mxu0 0.0
    %686 = vmatprep.subr.mxu0 0.0
    %687 = vmatpush1.msra.mxu0 0.0
    %688 = vmatprep.subr.mxu0 0.0
    %689 = vmatpush1.msra.mxu0 0.0
    %690 = vmatprep.subr.mxu0 0.0
    %691 = vmatpush1.msra.mxu0 0.0
    %692 = vmatprep.subr.mxu0 0.0
    %693 = vmatpush1.msra.mxu0 0.0
    %694 = vmatprep.subr.mxu0 0.0
    %695 = vmatpush1.msra.mxu0 0.0
    %696 = vmatprep.subr.mxu0 0.0
    %697 = vmatpush1.msra.mxu0 0.0
    %698 = vmatprep.subr.mxu0 0.0
    %699 = vmatpush1.msra.mxu0 0.0
    %700 = vmatprep.subr.mxu0 0.0
    %701 = vmatpush1.msra.mxu0 0.0
    %702 = vmatprep.subr.mxu0 0.0
    %703 = vmatpush1.msra.mxu0 0.0
    %704 = vmatprep.subr.mxu0 0.0
    %705 = vmatpush1.msra.mxu0 0.0
    %706 = vmatprep.subr.mxu0 0.0
    %707 = vmatpush1.msra.mxu0 0.0
    %708 = vmatprep.subr.mxu0 0.0
    %709 = vmatpush1.msra.mxu0 0.0
    %710 = vmatprep.subr.mxu0 0.0
    %711 = vmatpush1.msra.mxu0 0.0
    %712 = vmatprep.subr.mxu0 0.0
    %713 = vmatpush1.msra.mxu0 0.0
    %714 = vmatprep.subr.mxu0 0.0
    %715 = vmatpush1.msra.mxu0 0.0
    %716 = vmatprep.subr.mxu0 0.0
    %717 = vmatpush1.msra.mxu0 0.0
    %718 = vmatprep.subr.mxu0 0.0
    %719 = vmatpush1.msra.mxu0 0.0
    %720 = vmatprep.subr.mxu0 0.0
    %721 = vmatpush1.msra.mxu0 0.0
    %722 = vmatprep.subr.mxu0 0.0
    %723 = vmatpush1.msra.mxu0 0.0
    %724 = vmatprep.subr.mxu0 0.0
    %725 = vmatpush1.msra.mxu0 0.0
    %726 = vmatprep.subr.mxu0 0.0
    %727 = vmatpush1.msra.mxu0 0.0
    %728 = vmatprep.mubr.f32.mxu0 0.0
    %729 = vmatmul.mubr.f32.gmra.mrb[0].mxu0 %v105
    %v730 = vpop.f32.mrb[0].mxu0
    %v731 = vadd.f32 0.0, %v730
    %v732 = vpop.f32.mrb[0].mxu0
    %733 = vmatprep.mubr.f32.mxu0 0.0
    %734 = vmatmul.mubr.f32.gmra.mrb[0].mxu0 %v108
    %v735 = vpop.f32.mrb[0].mxu0
    %v736 = vadd.f32 0.0, %v735
    %v737 = vpop.f32.mrb[0].mxu0
    %738 = vdwg.mxu0
    %s739 = scalar_lea.vmem [#allocation2], 256
    %v740 = vld [vmem:[%s739] sm:$0xff]
    %v741 = vld [vmem:[%s739 + $0x8] sm:$0xff]
    %v742 = vld [vmem:[%s739 + $0x10] sm:$0xff]
    %v743 = vld [vmem:[%s739 + $0x18] sm:$0xff]
    %v744 = vld [vmem:[%s739 + $0x20] sm:$0xff]
    %v745 = vld [vmem:[%s739 + $0x28] sm:$0xff]
    %v746 = vld [vmem:[%s739 + $0x30] sm:$0xff]
    %v747 = vld [vmem:[%s739 + $0x38] sm:$0xff]
    %v748 = vld [vmem:[%s739 + $0x40] sm:$0xff]
    %v749 = vld [vmem:[%s739 + $0x48] sm:$0xff]
    %v750 = vld [vmem:[%s739 + $0x50] sm:$0xff]
    %v751 = vld [vmem:[%s739 + $0x58] sm:$0xff]
    %v752 = vld [vmem:[%s739 + $0x60] sm:$0xff]
    %v753 = vld [vmem:[%s739 + $0x68] sm:$0xff]
    %v754 = vld [vmem:[%s739 + $0x70] sm:$0xff]
    %v755 = vld [vmem:[%s739 + $0x78] sm:$0xff]
    %s756 = scalar_lea.vmem [#allocation4], 2
    %v757 = vld [vmem:[%s756] sm:$0x1]
    %v759 = vlaneseq
    %v760 = vshrl.u32 %v759, 7
    %v761 = vsub.s32 0, %v760
    %v762 = vrot.slane %v757, %v761
    %764 = vmatprep.subr.mxu0 0.0
    %765 = vmatpush1.msra.mxu0 %v740
    %766 = vmatprep.subr.mxu0 0.0
    %767 = vmatpush1.msra.mxu0 %v741
    %768 = vmatprep.subr.mxu0 0.0
    %769 = vmatpush1.msra.mxu0 %v742
    %770 = vmatprep.subr.mxu0 0.0
    %771 = vmatpush1.msra.mxu0 %v743
    %772 = vmatprep.subr.mxu0 0.0
    %773 = vmatpush1.msra.mxu0 %v744
    %774 = vmatprep.subr.mxu0 0.0
    %775 = vmatpush1.msra.mxu0 %v745
    %776 = vmatprep.subr.mxu0 0.0
    %777 = vmatpush1.msra.mxu0 %v746
    %778 = vmatprep.subr.mxu0 0.0
    %779 = vmatpush1.msra.mxu0 %v747
    %780 = vmatprep.subr.mxu0 0.0
    %781 = vmatpush1.msra.mxu0 %v748
    %782 = vmatprep.subr.mxu0 0.0
    %783 = vmatpush1.msra.mxu0 %v749
    %784 = vmatprep.subr.mxu0 0.0
    %785 = vmatpush1.msra.mxu0 %v750
    %786 = vmatprep.subr.mxu0 0.0
    %787 = vmatpush1.msra.mxu0 %v751
    %788 = vmatprep.subr.mxu0 0.0
    %789 = vmatpush1.msra.mxu0 %v752
    %790 = vmatprep.subr.mxu0 0.0
    %791 = vmatpush1.msra.mxu0 %v753
    %792 = vmatprep.subr.mxu0 0.0
    %793 = vmatpush1.msra.mxu0 %v754
    %794 = vmatprep.subr.mxu0 0.0
    %795 = vmatpush1.msra.mxu0 %v755
    %796 = vmatprep.subr.mxu0 0.0
    %797 = vmatpush1.msra.mxu0 0.0
    %798 = vmatprep.subr.mxu0 0.0
    %799 = vmatpush1.msra.mxu0 0.0
    %800 = vmatprep.subr.mxu0 0.0
    %801 = vmatpush1.msra.mxu0 0.0
    %802 = vmatprep.subr.mxu0 0.0
    %803 = vmatpush1.msra.mxu0 0.0
    %804 = vmatprep.subr.mxu0 0.0
    %805 = vmatpush1.msra.mxu0 0.0
    %806 = vmatprep.subr.mxu0 0.0
    %807 = vmatpush1.msra.mxu0 0.0
    %808 = vmatprep.subr.mxu0 0.0
    %809 = vmatpush1.msra.mxu0 0.0
    %810 = vmatprep.subr.mxu0 0.0
    %811 = vmatpush1.msra.mxu0 0.0
    %812 = vmatprep.subr.mxu0 0.0
    %813 = vmatpush1.msra.mxu0 0.0
    %814 = vmatprep.subr.mxu0 0.0
    %815 = vmatpush1.msra.mxu0 0.0
    %816 = vmatprep.subr.mxu0 0.0
    %817 = vmatpush1.msra.mxu0 0.0
    %818 = vmatprep.subr.mxu0 0.0
    %819 = vmatpush1.msra.mxu0 0.0
    %820 = vmatprep.subr.mxu0 0.0
    %821 = vmatpush1.msra.mxu0 0.0
    %822 = vmatprep.subr.mxu0 0.0
    %823 = vmatpush1.msra.mxu0 0.0
    %824 = vmatprep.subr.mxu0 0.0
    %825 = vmatpush1.msra.mxu0 0.0
    %826 = vmatprep.subr.mxu0 0.0
    %827 = vmatpush1.msra.mxu0 0.0
    %828 = vmatprep.mubr.f32.mxu0 0.0
    %829 = vmatmul.mubr.f32.gmra.mrb[0].mxu0 %v731
    %v830 = vpop.f32.mrb[0].mxu0
    %v831 = vadd.f32 %v762, %v830
    %v832 = vpop.f32.mrb[0].mxu0
    %833 = vmatprep.mubr.f32.mxu0 0.0
    %834 = vmatmul.mubr.f32.gmra.mrb[0].mxu0 %v736
    %v835 = vpop.f32.mrb[0].mxu0
    %v836 = vadd.f32 %v762, %v835
    %v837 = vpop.f32.mrb[0].mxu0
    %838 = vdwg.mxu0
    %v839 = vmax.f32 %v831, 0.0
    %v840 = vmax.f32 %v836, 0.0
    %s841 = scalar_lea.vmem [#allocation6], 256
    %v842 = vld [vmem:[%s841] sm:$0xff]
    %v843 = vld [vmem:[%s841 + $0x8] sm:$0xff]
    %v844 = vld [vmem:[%s841 + $0x10] sm:$0xff]
    %v845 = vld [vmem:[%s841 + $0x18] sm:$0xff]
    %v846 = vld [vmem:[%s841 + $0x20] sm:$0xff]
    %v847 = vld [vmem:[%s841 + $0x28] sm:$0xff]
    %v848 = vld [vmem:[%s841 + $0x30] sm:$0xff]
    %v849 = vld [vmem:[%s841 + $0x38] sm:$0xff]
    %v850 = vld [vmem:[%s841 + $0x40] sm:$0xff]
    %v851 = vld [vmem:[%s841 + $0x48] sm:$0xff]
    %v852 = vld [vmem:[%s841 + $0x50] sm:$0xff]
    %v853 = vld [vmem:[%s841 + $0x58] sm:$0xff]
    %v854 = vld [vmem:[%s841 + $0x60] sm:$0xff]
    %v855 = vld [vmem:[%s841 + $0x68] sm:$0xff]
    %v856 = vld [vmem:[%s841 + $0x70] sm:$0xff]
    %v857 = vld [vmem:[%s841 + $0x78] sm:$0xff]
    %s858 = scalar_lea.vmem [#allocation7], 2
    %v859 = vld [vmem:[%s858] sm:$0x1]
    %v861 = vlaneseq
    %v862 = vshrl.u32 %v861, 7
    %v863 = vsub.s32 0, %v862
    %v864 = vrot.slane %v859, %v863
    %866 = vmatprep.subr.mxu0 0.0
    %867 = vmatpush1.msra.mxu0 %v842
    %868 = vmatprep.subr.mxu0 0.0
    %869 = vmatpush1.msra.mxu0 %v843
    %870 = vmatprep.subr.mxu0 0.0
    %871 = vmatpush1.msra.mxu0 %v844
    %872 = vmatprep.subr.mxu0 0.0
    %873 = vmatpush1.msra.mxu0 %v845
    %874 = vmatprep.subr.mxu0 0.0
    %875 = vmatpush1.msra.mxu0 %v846
    %876 = vmatprep.subr.mxu0 0.0
    %877 = vmatpush1.msra.mxu0 %v847
    %878 = vmatprep.subr.mxu0 0.0
    %879 = vmatpush1.msra.mxu0 %v848
    %880 = vmatprep.subr.mxu0 0.0
    %881 = vmatpush1.msra.mxu0 %v849
    %882 = vmatprep.subr.mxu0 0.0
    %883 = vmatpush1.msra.mxu0 %v850
    %884 = vmatprep.subr.mxu0 0.0
    %885 = vmatpush1.msra.mxu0 %v851
    %886 = vmatprep.subr.mxu0 0.0
    %887 = vmatpush1.msra.mxu0 %v852
    %888 = vmatprep.subr.mxu0 0.0
    %889 = vmatpush1.msra.mxu0 %v853
    %890 = vmatprep.subr.mxu0 0.0
    %891 = vmatpush1.msra.mxu0 %v854
    %892 = vmatprep.subr.mxu0 0.0
    %893 = vmatpush1.msra.mxu0 %v855
    %894 = vmatprep.subr.mxu0 0.0
    %895 = vmatpush1.msra.mxu0 %v856
    %896 = vmatprep.subr.mxu0 0.0
    %897 = vmatpush1.msra.mxu0 %v857
    %898 = vmatprep.subr.mxu0 0.0
    %899 = vmatpush1.msra.mxu0 0.0
    %900 = vmatprep.subr.mxu0 0.0
    %901 = vmatpush1.msra.mxu0 0.0
    %902 = vmatprep.subr.mxu0 0.0
    %903 = vmatpush1.msra.mxu0 0.0
    %904 = vmatprep.subr.mxu0 0.0
    %905 = vmatpush1.msra.mxu0 0.0
    %906 = vmatprep.subr.mxu0 0.0
    %907 = vmatpush1.msra.mxu0 0.0
    %908 = vmatprep.subr.mxu0 0.0
    %909 = vmatpush1.msra.mxu0 0.0
    %910 = vmatprep.subr.mxu0 0.0
    %911 = vmatpush1.msra.mxu0 0.0
    %912 = vmatprep.subr.mxu0 0.0
    %913 = vmatpush1.msra.mxu0 0.0
    %914 = vmatprep.subr.mxu0 0.0
    %915 = vmatpush1.msra.mxu0 0.0
    %916 = vmatprep.subr.mxu0 0.0
    %917 = vmatpush1.msra.mxu0 0.0
    %918 = vmatprep.subr.mxu0 0.0
    %919 = vmatpush1.msra.mxu0 0.0
    %920 = vmatprep.subr.mxu0 0.0
    %921 = vmatpush1.msra.mxu0 0.0
    %922 = vmatprep.subr.mxu0 0.0
    %923 = vmatpush1.msra.mxu0 0.0
    %924 = vmatprep.subr.mxu0 0.0
    %925 = vmatpush1.msra.mxu0 0.0
    %926 = vmatprep.subr.mxu0 0.0
    %927 = vmatpush1.msra.mxu0 0.0
    %928 = vmatprep.subr.mxu0 0.0
    %929 = vmatpush1.msra.mxu0 0.0
    %930 = vmatprep.mubr.f32.mxu0 0.0
    %931 = vmatmul.mubr.f32.gmra.mrb[0].mxu0 %v839
    %v932 = vpop.f32.mrb[0].mxu0
    %v933 = vadd.f32 %v864, %v932
    %v934 = vpop.f32.mrb[0].mxu0
    %935 = vmatprep.mubr.f32.mxu0 0.0
    %936 = vmatmul.mubr.f32.gmra.mrb[0].mxu0 %v840
    %v937 = vpop.f32.mrb[0].mxu0
    %v938 = vadd.f32 %v864, %v937
    %v939 = vpop.f32.mrb[0].mxu0
    %940 = vdwg.mxu0
    %v941 = vmax.f32 %v933, 0.0
    %v942 = vmax.f32 %v938, 0.0
    %v943 = vld [vmem:[#allocation9] sm:$0xff]
    %v944 = vld [vmem:[#allocation9 + $0x8] sm:$0xff]
    %v945 = vld [vmem:[#allocation9 + $0x10] sm:$0xff]
    %v946 = vld [vmem:[#allocation9 + $0x18] sm:$0xff]
    %v947 = vld [vmem:[#allocation9 + $0x20] sm:$0xff]
    %v948 = vld [vmem:[#allocation9 + $0x28] sm:$0xff]
    %v949 = vld [vmem:[#allocation9 + $0x30] sm:$0xff]
    %v950 = vld [vmem:[#allocation9 + $0x38] sm:$0xff]
    %v951 = vld [vmem:[#allocation9 + $0x40] sm:$0xff]
    %v952 = vld [vmem:[#allocation9 + $0x48] sm:$0xff]
    %v953 = vld [vmem:[#allocation9 + $0x50] sm:$0xff]
    %v954 = vld [vmem:[#allocation9 + $0x58] sm:$0xff]
    %v955 = vld [vmem:[#allocation9 + $0x60] sm:$0xff]
    %v956 = vld [vmem:[#allocation9 + $0x68] sm:$0xff]
    %v957 = vld [vmem:[#allocation9 + $0x70] sm:$0xff]
    %v958 = vld [vmem:[#allocation9 + $0x78] sm:$0xff]
    %v959 = vld [vmem:[%s7] sm:$0x1]
    %v961 = vlaneseq
    %v962 = vshrl.u32 %v961, 7
    %v963 = vsub.s32 0, %v962
    %v964 = vrot.slane %v959, %v963
    %966 = vmatprep.subr.mxu0 0.0
    %967 = vmatpush1.msra.mxu0 %v943
    %968 = vmatprep.subr.mxu0 0.0
    %969 = vmatpush1.msra.mxu0 %v944
    %970 = vmatprep.subr.mxu0 0.0
    %971 = vmatpush1.msra.mxu0 %v945
    %972 = vmatprep.subr.mxu0 0.0
    %973 = vmatpush1.msra.mxu0 %v946
    %974 = vmatprep.subr.mxu0 0.0
    %975 = vmatpush1.msra.mxu0 %v947
    %976 = vmatprep.subr.mxu0 0.0
    %977 = vmatpush1.msra.mxu0 %v948
    %978 = vmatprep.subr.mxu0 0.0
    %979 = vmatpush1.msra.mxu0 %v949
    %980 = vmatprep.subr.mxu0 0.0
    %981 = vmatpush1.msra.mxu0 %v950
    %982 = vmatprep.subr.mxu0 0.0
    %983 = vmatpush1.msra.mxu0 %v951
    %984 = vmatprep.subr.mxu0 0.0
    %985 = vmatpush1.msra.mxu0 %v952
    %986 = vmatprep.subr.mxu0 0.0
    %987 = vmatpush1.msra.mxu0 %v953
    %988 = vmatprep.subr.mxu0 0.0
    %989 = vmatpush1.msra.mxu0 %v954
    %990 = vmatprep.subr.mxu0 0.0
    %991 = vmatpush1.msra.mxu0 %v955
    %992 = vmatprep.subr.mxu0 0.0
    %993 = vmatpush1.msra.mxu0 %v956
    %994 = vmatprep.subr.mxu0 0.0
    %995 = vmatpush1.msra.mxu0 %v957
    %996 = vmatprep.subr.mxu0 0.0
    %997 = vmatpush1.msra.mxu0 %v958
    %998 = vmatprep.subr.mxu0 0.0
    %999 = vmatpush1.msra.mxu0 0.0
    %1000 = vmatprep.subr.mxu0 0.0
    %1001 = vmatpush1.msra.mxu0 0.0
    %1002 = vmatprep.subr.mxu0 0.0
    %1003 = vmatpush1.msra.mxu0 0.0
    %1004 = vmatprep.subr.mxu0 0.0
    %1005 = vmatpush1.msra.mxu0 0.0
    %1006 = vmatprep.subr.mxu0 0.0
    %1007 = vmatpush1.msra.mxu0 0.0
    %1008 = vmatprep.subr.mxu0 0.0
    %1009 = vmatpush1.msra.mxu0 0.0
    %1010 = vmatprep.subr.mxu0 0.0
    %1011 = vmatpush1.msra.mxu0 0.0
    %1012 = vmatprep.subr.mxu0 0.0
    %1013 = vmatpush1.msra.mxu0 0.0
    %1014 = vmatprep.subr.mxu0 0.0
    %1015 = vmatpush1.msra.mxu0 0.0
    %1016 = vmatprep.subr.mxu0 0.0
    %1017 = vmatpush1.msra.mxu0 0.0
    %1018 = vmatprep.subr.mxu0 0.0
    %1019 = vmatpush1.msra.mxu0 0.0
    %1020 = vmatprep.subr.mxu0 0.0
    %1021 = vmatpush1.msra.mxu0 0.0
    %1022 = vmatprep.subr.mxu0 0.0
    %1023 = vmatpush1.msra.mxu0 0.0
    %1024 = vmatprep.subr.mxu0 0.0
    %1025 = vmatpush1.msra.mxu0 0.0
    %1026 = vmatprep.subr.mxu0 0.0
    %1027 = vmatpush1.msra.mxu0 0.0
    %1028 = vmatprep.subr.mxu0 0.0
    %1029 = vmatpush1.msra.mxu0 0.0
    %1030 = vmatprep.mubr.f32.mxu0 0.0
    %1031 = vmatmul.mubr.f32.gmra.mrb[0].mxu0 %v941
    %v1032 = vpop.f32.mrb[0].mxu0
    %v1033 = vadd.f32 %v964, %v1032
    %v1034 = vpop.f32.mrb[0].mxu0
    %1035 = vmatprep.mubr.f32.mxu0 0.0
    %1036 = vmatmul.mubr.f32.gmra.mrb[0].mxu0 %v942
    %v1037 = vpop.f32.mrb[0].mxu0
    %v1038 = vadd.f32 %v964, %v1037
    %v1039 = vpop.f32.mrb[0].mxu0
    %1040 = vdwg.mxu0
    %1041 = vst [vmem:[%s8] sm:$0xff] %v1033
    %1042 = vst [vmem:[%s8 + $0x8] sm:$0xff] %v1038
    // Predicated region
    $region54: #{gin_forward.1} parent=1 // pred_check
      _
    $region55: #{gin_forward.1} parent=1 // pred_check_branch
      %1044 = sbr.rel (0) target = $region57
    $region56: #{gin_forward.1} parent=1 // pred_region
      _
    $region57: #{gin_forward.1} parent=1 // pred_fallthru
      _
    // Predicated region
    $region58: #{gin_forward.1} parent=1 // pred_check
      _
    $region59: #{gin_forward.1} parent=1 // pred_check_branch
      %1046 = sbr.rel (0) target = $region61
    $region60: #{gin_forward.1} parent=1 // pred_region
      _
    $region61: #{gin_forward.1} parent=1 // pred_fallthru
      _
    %1047 = vsyncpa [#allocation3], 1
    %1048 = vsyncpa [#allocation5], 1
    %1049 = vsyncpa [#allocation8], 1

</llo_original>
